<compile_context>
chip_gen: v5e
topology: v5e:2x2
jax: 0.10.0
libtpu: 0.0.40
codegen_flags: <defaults>
</compile_context>

<pallas_src>
import functools
import math

import jax
import jax.numpy as jnp
from jax.experimental import pallas as pl
from jax.experimental.pallas import tpu as pltpu


# ----------------------------------------------------------------------------
# In-kernel helper: build the (K*C, L_out) im2col operand for a causal,
# dilated conv.  `left` columns of zeros are prepended in-register (causal
# padding), then K shifted slices are stacked along the sublane axis.
# ----------------------------------------------------------------------------
def _causal_im2col(h, l_out, kernel_size, dilation, left, compute_dtype):
    c = h.shape[0]
    if left > 0:
        h = jnp.concatenate([jnp.zeros((c, left), h.dtype), h], axis=1)
    parts = [h[:, k * dilation:k * dilation + l_out] for k in range(kernel_size)]
    return jnp.concatenate(parts, axis=0).astype(compute_dtype)


# ----------------------------------------------------------------------------
# Fused TemporalBlock kernel (one batch element per grid step).
# ----------------------------------------------------------------------------
def _temporal_block_kernel(*refs, n_layers, kernel_size, dilation, seq_len,
                           use_padding, use_residual, has_down, has_pe,
                           compute_dtype):
    # ---- unpack refs (structure is static) ----
    idx = 0
    x_ref = refs[idx]; idx += 1                          # (Cin, L)
    w_refs = refs[idx:idx + n_layers]; idx += n_layers   # (Cout, K*C_i) each
    b_ref = refs[idx]; idx += 1                          # (n_layers, Cout, 1) f32
    dw_ref = db_ref = None
    if has_down:
        dw_ref = refs[idx]; db_ref = refs[idx + 1]; idx += 2   # (Cout,Cin),(Cout,1)
    pe_ref = None
    if has_pe:
        pe_ref = refs[idx]; idx += 1                     # (Cout, L_out0) f32
    o_ref = refs[idx]                                    # (Cout, L_final)

    pad = dilation * (kernel_size - 1)
    left = pad if use_padding else 0

    x = x_ref[...].astype(jnp.float32)                   # (Cin, L)

    # Residual path: fused 1x1 down-sample conv (single matmul) or identity.
    identity = None
    if use_residual:
        if has_down:
            identity = jnp.dot(dw_ref[...], x.astype(compute_dtype),
                               preferred_element_type=jnp.float32)
            identity = identity + db_ref[...]
        else:
            identity = x

    # Stack of dilated causal convs; activations stay in VMEM/vregs.
    h = x
    l_cur = seq_len
    for i in range(n_layers):
        l_out = l_cur + left - pad
        xi = _causal_im2col(h, l_out, kernel_size, dilation, left, compute_dtype)
        acc = jnp.dot(w_refs[i][...], xi,
                      preferred_element_type=jnp.float32)       # (Cout, l_out)
        acc = acc + b_ref[i]                                    # bias, f32 epilogue
        if i < n_layers - 1:
            acc = jnp.maximum(acc, 0.0)                         # ReLU
            if i == 0 and has_pe:
                acc = acc + pe_ref[...]                         # positional emb
        # dropout(p=0.0) == identity at eval time -> intentionally omitted
        h = acc
        l_cur = l_out

    if use_residual:
        h = h + identity[:, identity.shape[1] - l_cur:]

    o_ref[...] = h.astype(o_ref.dtype)


# ----------------------------------------------------------------------------
# Wrapper: whole TemporalBlock forward = one pallas_call over grid=(B,)
# ----------------------------------------------------------------------------
def temporal_block_forward(x, params, *, kernel_size, dilation, n_layers,
                           use_padding, use_residual, pos_embedding,
                           compute_dtype=jnp.bfloat16):
    B, Cin, L = x.shape
    Cout = params["conv_w"][0].shape[0]
    pad = dilation * (kernel_size - 1)
    left = pad if use_padding else 0
    l_out0 = L + left - pad
    l_final = L + n_layers * (left - pad)
    assert l_final > 0

    has_down = use_residual and (params["down_w"] is not None)
    has_pe = (pos_embedding is not None) and (n_layers > 1)
    assert use_residual is False or has_down or Cin == Cout

    # Lane-dense im2col weight layout: (Cout, Cin, K) -> (Cout, K*Cin),
    # column ordering k-major / channel-minor to match _causal_im2col rows.
    w_flat = []
    for w in params["conv_w"]:
        co, ci, k = w.shape
        w_flat.append(
            jnp.transpose(w, (0, 2, 1)).reshape(co, k * ci).astype(compute_dtype))
    b_all = jnp.stack(params["conv_b"]).reshape(n_layers, Cout, 1).astype(jnp.float32)

    args = [x]
    in_specs = [pl.BlockSpec((None, Cin, L), lambda b: (b, 0, 0))]
    for wf in w_flat:
        args.append(wf)
        in_specs.append(pl.BlockSpec(wf.shape, lambda b: (0, 0)))
    args.append(b_all)
    in_specs.append(pl.BlockSpec(b_all.shape, lambda b: (0, 0, 0)))
    if has_down:
        dw = params["down_w"].reshape(Cout, Cin).astype(compute_dtype)
        db = params["down_b"].reshape(Cout, 1).astype(jnp.float32)
        args += [dw, db]
        in_specs += [pl.BlockSpec((Cout, Cin), lambda b: (0, 0)),
                     pl.BlockSpec((Cout, 1), lambda b: (0, 0))]
    if has_pe:
        pe = pos_embedding[0, :, :l_out0].astype(jnp.float32)   # (Cout, l_out0)
        args.append(pe)
        in_specs.append(pl.BlockSpec((Cout, l_out0), lambda b: (0, 0)))

    kernel = functools.partial(
        _temporal_block_kernel, n_layers=n_layers, kernel_size=kernel_size,
        dilation=dilation, seq_len=L, use_padding=use_padding,
        use_residual=use_residual, has_down=has_down, has_pe=has_pe,
        compute_dtype=compute_dtype)

    return pl.pallas_call(
        kernel,
        out_shape=jax.ShapeDtypeStruct((B, Cout, l_final), jnp.float32),
        grid=(B,),
        in_specs=in_specs,
        out_specs=pl.BlockSpec((None, Cout, l_final), lambda b: (b, 0, 0)),
        compiler_params=pltpu.CompilerParams(
            dimension_semantics=("parallel",)),
    )(*args)


# ----------------------------------------------------------------------------
# Parameter construction (deterministic) — plain JAX glue
# ----------------------------------------------------------------------------
def weight_norm_effective(v, g):
    """weight_norm with dim=0 (per-output-channel norm over (Cin, K))."""
    norm = jnp.sqrt(jnp.sum(v * v, axis=(1, 2), keepdims=True))
    return g * v / norm


def make_pos_embedding(hidden_dim, groups=1, max_length=64):
    h = hidden_dim // groups
    position = jnp.arange(max_length, dtype=jnp.float32)[:, None]
    div_term = jnp.exp(
        jnp.arange(0, h, 2, dtype=jnp.float32) * (-math.log(10000.0) / h))
    pe = jnp.zeros((h, max_length), dtype=jnp.float32)
    pe = pe.at[0::2, :].set(jnp.sin(position * div_term).T)
    pe = pe.at[1::2, :].set(jnp.cos(position * div_term).T)
    pe = pe * 0.5
    pe = jnp.tile(pe, (groups, 1))
    return pe[None]  # (1, hidden_dim, max_length)


def init_temporal_block_params(key, in_channels, out_channels, kernel_size,
                               n_layers, use_residual):
    keys = jax.random.split(key, 2 * n_layers + 2)
    params = {"conv_w": [], "conv_b": []}
    for i in range(n_layers):
        cin = in_channels if i == 0 else out_channels
        v = jax.random.normal(keys[2 * i], (out_channels, cin, kernel_size),
                              jnp.float32) * 0.3
        g = 1.0 + 0.1 * jax.random.normal(keys[2 * i + 1],
                                          (out_channels, 1, 1), jnp.float32)
        params["conv_w"].append(weight_norm_effective(v, g))
        params["conv_b"].append(
            0.05 * jnp.arange(out_channels, dtype=jnp.float32) - 0.1)
    if use_residual and in_channels != out_channels:
        params["down_w"] = jax.random.normal(
            keys[-2], (out_channels, in_channels, 1), jnp.float32) * 0.3
        params["down_b"] = 0.02 * jnp.arange(out_channels, dtype=jnp.float32)
    else:
        params["down_w"] = None
        params["down_b"] = None
    return params


# ----------------------------------------------------------------------------
# Pure-JAX f32 reference (correctness check)
# ----------------------------------------------------------------------------
def ref_conv1d(x, w, b, dilation):
    y = jax.lax.conv_general_dilated(
        x, w, window_strides=(1,), padding="VALID", rhs_dilation=(dilation,),
        dimension_numbers=("NCH", "OIH", "NCH"))
    return y + b.reshape(1, -1, 1)


def ref_temporal_block(x, params, *, kernel_size, dilation, n_layers,
                       use_padding, use_residual, pos_embedding):
    identity = x
    if use_residual and params["down_w"] is not None:
        identity = ref_conv1d(identity, params["down_w"], params["down_b"], 1)
    pad = dilation * (kernel_size - 1)
    for i in range(n_layers - 1):
        if use_padding:
            x = jnp.pad(x, ((0, 0), (0, 0), (pad, 0)))
        x = ref_conv1d(x, params["conv_w"][i], params["conv_b"][i], dilation)
        x = jnp.maximum(x, 0.0)
        if i == 0 and pos_embedding is not None:
            x = x + pos_embedding[..., : x.shape[-1]]
    if use_padding:
        x = jnp.pad(x, ((0, 0), (0, 0), (pad, 0)))
    x = ref_conv1d(x, params["conv_w"][-1], params["conv_b"][-1], dilation)
    if use_residual:
        x = x + identity[..., -x.shape[-1]:]
    return x


# ----------------------------------------------------------------------------
if __name__ == "__main__":
    # Small config consistent with the module.
    B, IN_CH, OUT_CH, L = 2, 4, 8, 16
    KERNEL_SIZE, DILATION, N_LAYERS = 3, 2, 2
    USE_PADDING, USE_RESIDUAL, USE_POS = True, True, True

    key = jax.random.PRNGKey(0)
    kx, kp = jax.random.split(key)
    x = jax.random.normal(kx, (B, IN_CH, L), jnp.float32)

    params = init_temporal_block_params(kp, IN_CH, OUT_CH, KERNEL_SIZE,
                                        N_LAYERS, USE_RESIDUAL)
    pos_emb = make_pos_embedding(OUT_CH, groups=1, max_length=64) if USE_POS else None

    cfg = dict(kernel_size=KERNEL_SIZE, dilation=DILATION, n_layers=N_LAYERS,
               use_padding=USE_PADDING, use_residual=USE_RESIDUAL,
               pos_embedding=pos_emb)

    ref = jax.block_until_ready(ref_temporal_block(x, params, **cfg))

    # f32 compute path: must match the plain-JAX reference tightly.
    out_f32 = jax.block_until_ready(
        temporal_block_forward(x, params, compute_dtype=jnp.float32, **cfg))
    assert out_f32.shape == (B, OUT_CH, L), out_f32.shape
    assert jnp.allclose(out_f32, ref, atol=1e-4, rtol=1e-4), \
        float(jnp.max(jnp.abs(out_f32 - ref)))

    # Production default: bf16 MXU operands / f32 accumulate (loose tolerance).
    out_bf16 = jax.block_until_ready(
        temporal_block_forward(x, params, compute_dtype=jnp.bfloat16, **cfg))
    assert out_bf16.shape == (B, OUT_CH, L), out_bf16.shape
    assert jnp.allclose(out_bf16, ref, atol=2e-1, rtol=2e-1), \
        float(jnp.max(jnp.abs(out_bf16 - ref)))

    print("KERNEL_OK")
</pallas_src>

<mosaic_0001>
module attributes {stable_mosaic.version = 11 : i64} {
  func.func @_temporal_block_kernel(%arg0: i32, %arg1: memref<1x4x16xf32, #tpu.memory_space<vmem>>, %arg2: memref<8x12xf32, #tpu.memory_space<vmem>>, %arg3: memref<8x24xf32, #tpu.memory_space<vmem>>, %arg4: memref<2x8x1xf32, #tpu.memory_space<vmem>>, %arg5: memref<8x4xf32, #tpu.memory_space<vmem>>, %arg6: memref<8x1xf32, #tpu.memory_space<vmem>>, %arg7: memref<8x16xf32, #tpu.memory_space<vmem>>, %arg8: memref<1x8x16xf32, #tpu.memory_space<vmem>>) attributes {dimension_semantics = [#tpu.dimension_semantics<parallel>], iteration_bounds = array<i64: 2>, scalar_prefetch = 0 : i64, scratch_operands = 0 : i64, tpu.core_type = #tpu.core_type<tc>, window_params = [{transform_indices = @transform_0, window_bounds = array<i64: 1, 4, 16>}, {pipeline_mode = #tpu.pipeline_mode<synchronous>, transform_indices = @transform_1, window_bounds = array<i64: 8, 12>}, {pipeline_mode = #tpu.pipeline_mode<synchronous>, transform_indices = @transform_2, window_bounds = array<i64: 8, 24>}, {pipeline_mode = #tpu.pipeline_mode<synchronous>, transform_indices = @transform_3, window_bounds = array<i64: 2, 8, 1>}, {pipeline_mode = #tpu.pipeline_mode<synchronous>, transform_indices = @transform_4, window_bounds = array<i64: 8, 4>}, {pipeline_mode = #tpu.pipeline_mode<synchronous>, transform_indices = @transform_5, window_bounds = array<i64: 8, 1>}, {pipeline_mode = #tpu.pipeline_mode<synchronous>, transform_indices = @transform_6, window_bounds = array<i64: 8, 16>}, {transform_indices = @transform_7, window_bounds = array<i64: 1, 8, 16>}]} {
    %c0 = arith.constant 0 : index
    %c0_0 = arith.constant 0 : index
    %c0_1 = arith.constant 0 : index
    %0 = vector.load %arg1[%c0, %c0_0, %c0_1] : memref<1x4x16xf32, #tpu.memory_space<vmem>>, vector<1x4x16xf32>
    %1 = vector.shape_cast %0 : vector<1x4x16xf32> to vector<4x16xf32>
    %c0_2 = arith.constant 0 : index
    %c0_3 = arith.constant 0 : index
    %2 = vector.load %arg5[%c0_2, %c0_3] : memref<8x4xf32, #tpu.memory_space<vmem>>, vector<8x4xf32>
    %cst = arith.constant dense<0.000000e+00> : vector<8x16xf32>
    %3 = tpu.matmul %2, %1, %cst {dimension_numbers = #tpu.dot_dimension_numbers<[1], [0], [0], [1], [0, 0, 1, 1], [], []>} : vector<8x4xf32>, vector<4x16xf32>, vector<8x16xf32> -> vector<8x16xf32>
    %c0_4 = arith.constant 0 : index
    %c0_5 = arith.constant 0 : index
    %4 = vector.load %arg6[%c0_4, %c0_5] : memref<8x1xf32, #tpu.memory_space<vmem>>, vector<8x1xf32>
    %5 = vector.broadcast %4 : vector<8x1xf32> to vector<8x16xf32>
    %6 = arith.addf %3, %5 : vector<8x16xf32>
    %cst_6 = arith.constant 0.000000e+00 : f32
    %7 = vector.broadcast %cst_6 : f32 to vector<4x4xf32>
    %8 = tpu.concatenate %7, %1 in 1 : vector<4x4xf32>, vector<4x16xf32> -> vector<4x20xf32>
    %9 = vector.extract_strided_slice %8 {offsets = [0, 0], sizes = [4, 16], strides = [1, 1]} : vector<4x20xf32> to vector<4x16xf32>
    %10 = vector.extract_strided_slice %8 {offsets = [0, 2], sizes = [4, 16], strides = [1, 1]} : vector<4x20xf32> to vector<4x16xf32>
    %11 = vector.extract_strided_slice %8 {offsets = [0, 4], sizes = [4, 16], strides = [1, 1]} : vector<4x20xf32> to vector<4x16xf32>
    %12 = tpu.concatenate %9, %10, %11 in 0 : vector<4x16xf32>, vector<4x16xf32>, vector<4x16xf32> -> vector<12x16xf32>
    %c0_7 = arith.constant 0 : index
    %c0_8 = arith.constant 0 : index
    %13 = vector.load %arg2[%c0_7, %c0_8] : memref<8x12xf32, #tpu.memory_space<vmem>>, vector<8x12xf32>
    %cst_9 = arith.constant dense<0.000000e+00> : vector<8x16xf32>
    %14 = tpu.matmul %13, %12, %cst_9 {dimension_numbers = #tpu.dot_dimension_numbers<[1], [0], [0], [1], [0, 0, 1, 1], [], []>} : vector<8x12xf32>, vector<12x16xf32>, vector<8x16xf32> -> vector<8x16xf32>
    %c0_10 = arith.constant 0 : index
    %c0_11 = arith.constant 0 : index
    %c0_12 = arith.constant 0 : index
    %15 = vector.load %arg4[%c0_10, %c0_11, %c0_12] : memref<2x8x1xf32, #tpu.memory_space<vmem>>, vector<1x8x1xf32>
    %16 = vector.shape_cast %15 : vector<1x8x1xf32> to vector<8x1xf32>
    %17 = vector.broadcast %16 : vector<8x1xf32> to vector<8x16xf32>
    %18 = arith.addf %14, %17 : vector<8x16xf32>
    %cst_13 = arith.constant 0.000000e+00 : f32
    %19 = vector.broadcast %cst_13 : f32 to vector<8x16xf32>
    %20 = arith.maximumf %18, %19 : vector<8x16xf32>
    %c0_14 = arith.constant 0 : index
    %c0_15 = arith.constant 0 : index
    %21 = vector.load %arg7[%c0_14, %c0_15] : memref<8x16xf32, #tpu.memory_space<vmem>>, vector<8x16xf32>
    %22 = arith.addf %20, %21 : vector<8x16xf32>
    %cst_16 = arith.constant 0.000000e+00 : f32
    %23 = vector.broadcast %cst_16 : f32 to vector<8x4xf32>
    %24 = tpu.concatenate %23, %22 in 1 : vector<8x4xf32>, vector<8x16xf32> -> vector<8x20xf32>
    %25 = vector.extract_strided_slice %24 {offsets = [0, 0], sizes = [8, 16], strides = [1, 1]} : vector<8x20xf32> to vector<8x16xf32>
    %26 = vector.extract_strided_slice %24 {offsets = [0, 2], sizes = [8, 16], strides = [1, 1]} : vector<8x20xf32> to vector<8x16xf32>
    %27 = vector.extract_strided_slice %24 {offsets = [0, 4], sizes = [8, 16], strides = [1, 1]} : vector<8x20xf32> to vector<8x16xf32>
    %28 = tpu.concatenate %25, %26, %27 in 0 : vector<8x16xf32>, vector<8x16xf32>, vector<8x16xf32> -> vector<24x16xf32>
    %c0_17 = arith.constant 0 : index
    %c0_18 = arith.constant 0 : index
    %29 = vector.load %arg3[%c0_17, %c0_18] : memref<8x24xf32, #tpu.memory_space<vmem>>, vector<8x24xf32>
    %cst_19 = arith.constant dense<0.000000e+00> : vector<8x16xf32>
    %30 = tpu.matmul %29, %28, %cst_19 {dimension_numbers = #tpu.dot_dimension_numbers<[1], [0], [0], [1], [0, 0, 1, 1], [], []>} : vector<8x24xf32>, vector<24x16xf32>, vector<8x16xf32> -> vector<8x16xf32>
    %c1 = arith.constant 1 : index
    %c0_20 = arith.constant 0 : index
    %c0_21 = arith.constant 0 : index
    %31 = vector.load %arg4[%c1, %c0_20, %c0_21] : memref<2x8x1xf32, #tpu.memory_space<vmem>>, vector<1x8x1xf32>
    %32 = vector.shape_cast %31 : vector<1x8x1xf32> to vector<8x1xf32>
    %33 = vector.broadcast %32 : vector<8x1xf32> to vector<8x16xf32>
    %34 = arith.addf %30, %33 : vector<8x16xf32>
    %35 = arith.addf %34, %6 : vector<8x16xf32>
    %c0_22 = arith.constant 0 : index
    %c0_23 = arith.constant 0 : index
    %c0_24 = arith.constant 0 : index
    %36 = vector.load %arg8[%c0_22, %c0_23, %c0_24] : memref<1x8x16xf32, #tpu.memory_space<vmem>>, vector<1x8x16xf32>
    %37 = vector.shape_cast %36 : vector<1x8x16xf32> to vector<8x16xf32>
    %38 = vector.shape_cast %35 : vector<8x16xf32> to vector<1x8x16xf32>
    tpu.vector_store %arg8[%c0_22, %c0_23, %c0_24], %38 {strides = array<i32>} : memref<1x8x16xf32, #tpu.memory_space<vmem>>, vector<1x8x16xf32>,
    return
  }
  func.func @transform_0(%arg0: i32) -> (i32, i32, i32) {
    %c0_i32 = arith.constant 0 : i32
    %c0_i32_0 = arith.constant 0 : i32
    %c0_i32_1 = arith.constant 0 : i32
    return %arg0, %c0_i32, %c0_i32_0 : i32, i32, i32
  }
  func.func @transform_1(%arg0: i32) -> (i32, i32) {
    %c0_i32 = arith.constant 0 : i32
    %c0_i32_0 = arith.constant 0 : i32
    %c0_i32_1 = arith.constant 0 : i32
    return %c0_i32, %c0_i32_0 : i32, i32
  }
  func.func @transform_2(%arg0: i32) -> (i32, i32) {
    %c0_i32 = arith.constant 0 : i32
    %c0_i32_0 = arith.constant 0 : i32
    %c0_i32_1 = arith.constant 0 : i32
    return %c0_i32, %c0_i32_0 : i32, i32
  }
  func.func @transform_3(%arg0: i32) -> (i32, i32, i32) {
    %c0_i32 = arith.constant 0 : i32
    %c0_i32_0 = arith.constant 0 : i32
    %c0_i32_1 = arith.constant 0 : i32
    %c0_i32_2 = arith.constant 0 : i32
    return %c0_i32, %c0_i32_0, %c0_i32_1 : i32, i32, i32
  }
  func.func @transform_4(%arg0: i32) -> (i32, i32) {
    %c0_i32 = arith.constant 0 : i32
    %c0_i32_0 = arith.constant 0 : i32
    %c0_i32_1 = arith.constant 0 : i32
    return %c0_i32, %c0_i32_0 : i32, i32
  }
  func.func @transform_5(%arg0: i32) -> (i32, i32) {
    %c0_i32 = arith.constant 0 : i32
    %c0_i32_0 = arith.constant 0 : i32
    %c0_i32_1 = arith.constant 0 : i32
    return %c0_i32, %c0_i32_0 : i32, i32
  }
  func.func @transform_6(%arg0: i32) -> (i32, i32) {
    %c0_i32 = arith.constant 0 : i32
    %c0_i32_0 = arith.constant 0 : i32
    %c0_i32_1 = arith.constant 0 : i32
    return %c0_i32, %c0_i32_0 : i32, i32
  }
  func.func @transform_7(%arg0: i32) -> (i32, i32, i32) {
    %c0_i32 = arith.constant 0 : i32
    %c0_i32_0 = arith.constant 0 : i32
    %c0_i32_1 = arith.constant 0 : i32
    return %arg0, %c0_i32, %c0_i32_0 : i32, i32, i32
  }
}

</mosaic_0001>

<llo_original>
// kernel: tpu_custom_call.1
$region0: #{tpu_custom_call.1}
  #allocation0 [shape = 'u32[]', space=smem, size = 0x4, offset = 0x4, fixed_abs, tag = 'smem constant byte address 0x4 - core index']
  #allocation1 [shape = 'u32[72,128]{1,0:T(1,128)}', space=vmem, size = 0x9000, scoped, tag = 'internal scratch']
  %s0 = inlined_call_operand.vmem [shape: f32[2,4,16], index: 0, kind: input, shape index: {}]
  %s1 = inlined_call_operand.vmem [shape: f32[8,12], index: 1, kind: input, shape index: {}]
  %s2 = inlined_call_operand.vmem [shape: f32[8,24], index: 2, kind: input, shape index: {}]
  %s3 = inlined_call_operand.vmem [shape: f32[2,8,1], index: 3, kind: input, shape index: {}]
  %s4 = inlined_call_operand.vmem [shape: f32[8,4], index: 4, kind: input, shape index: {}]
  %s5 = inlined_call_operand.vmem [shape: f32[8,1], index: 5, kind: input, shape index: {}]
  %s6 = inlined_call_operand.vmem [shape: f32[8,16], index: 6, kind: input, shape index: {}]
  %s7 = inlined_call_operand.hbm [shape: f32[2,8,16], index: 7, kind: output, shape index: {}]
  %s8 = sld [smem:[#allocation0]]
  $region61: #{tpu_custom_call.1} parent=0
    _
  %s10 = ssub.s32 1, %s8
  %s11 = scalar_select 0, %s10, %s8
  $region1: #{tpu_custom_call.1} parent=0
    #allocation2 [shape = 'u8[8192]{0}', space=vmem, size = 0x2000, scoped, tag = 'output window, operand 0']
    #allocation3 [shape = 's32[2]{0}', space=sflag, size = 0x8, scoped, tag = 'scoped memory for tpu_custom_call.1']
    %12 = vsyncpa [#allocation3], 0
    %s13 = scalar_lea.sflag [#allocation3], 1
    %14 = vsyncpa %s13, 0
    loop: start=0, step=1, limit=4
    $region2: #{tpu_custom_call.1} parent=1 // loop_pre_header
      _
    $region3: #{tpu_custom_call.1} parent=1 // loop_header
      %s16 = sphi 0, %s20
      %p17 = scmp.ge.s32.totalorder %s16, 4
      %s26 = sphi 0, %s28
      %s29 = sphi 0, %s26
      %s30 = sphi 0, %s29
      %s46 = sphi 0, %s30
      %s50 = sphi 0, %s50
      %s52 = sphi 0, %s50
      %s53 = sphi 0, %s52
      %s67 = sphi 0, %s53
      %s71 = sphi 0, %s71
      %s73 = sphi 0, %s71
      %s74 = sphi 0, %s73
      %s88 = sphi 0, %s74
      %s92 = sphi 0, %s92
      %s94 = sphi 0, %s92
      %s95 = sphi 0, %s94
      %s109 = sphi 0, %s95
      %s113 = sphi 0, %s113
      %s115 = sphi 0, %s113
      %s116 = sphi 0, %s115
      %s130 = sphi 0, %s116
      %s134 = sphi 0, %s134
      %s136 = sphi 0, %s134
      %s137 = sphi 0, %s136
      %s151 = sphi 0, %s137
      %s155 = sphi 0, %s155
      %s157 = sphi 0, %s155
      %s158 = sphi 0, %s157
      %s172 = sphi 0, %s158
      %s178 = sphi 0, %s180
      %s181 = sphi 0, %s178
      %s182 = sphi 0, %s181
      %s198 = sphi 0, %s182
    $region4: #{tpu_custom_call.1} parent=1 // loop_header_branch
      %19 = sbr.rel (%p17) target = $region8
    $region5: #{tpu_custom_call.1} parent=1 // loop_body
      %s21 = ssub.s32 %s16, 1
      %s22 = ssub.s32 %s16, 2
      %s23 = sadd.s32 %s16, 1
      %s24 = ssub.s32 %s16, %s23
      %p25 = scmp.eq.s32.totalorder %s24, 0
      %s27 = sadd.s32 %s26, 1
      %s28 = scalar_select %p25, %s26, %s27
      %p31 = pneg %p25
      %p32 = scmp.eq.s32.totalorder %s16, 1
      %p33 = por %p31, %p32
      %p34 = scmp.ne.s32.totalorder %s26, %s29
      %p35 = scmp.eq.s32.totalorder %s16, 0
      %p36 = por %p34, %p35
      %p37 = scmp.ne.s32.totalorder %s26, %s29
      %p38 = scmp.eq.s32.totalorder %s21, 1
      %p39 = por %p37, %p38
      %p40 = scmp.ne.s32.totalorder %s29, %s30
      %p41 = scmp.eq.s32.totalorder %s21, 0
      %p42 = por %p40, %p41
      %p43 = scmp.ne.s32.totalorder %s29, %s30
      %p44 = scmp.eq.s32.totalorder %s22, 1
      %p45 = por %p43, %p44
      %p47 = scmp.ne.s32.totalorder %s30, %s46
      %p48 = scmp.eq.s32.totalorder %s22, 0
      %p49 = por %p47, %p48
      %s51 = sadd.s32 %s50, 1
      %p54 = scmp.eq.s32.totalorder %s16, 1
      %p55 = scmp.ne.s32.totalorder %s50, %s52
      %p56 = scmp.eq.s32.totalorder %s16, 0
      %p57 = por %p55, %p56
      %p58 = scmp.ne.s32.totalorder %s50, %s52
      %p59 = scmp.eq.s32.totalorder %s21, 1
      %p60 = por %p58, %p59
      %p61 = scmp.ne.s32.totalorder %s52, %s53
      %p62 = scmp.eq.s32.totalorder %s21, 0
      %p63 = por %p61, %p62
      %p64 = scmp.ne.s32.totalorder %s52, %s53
      %p65 = scmp.eq.s32.totalorder %s22, 1
      %p66 = por %p64, %p65
      %p68 = scmp.ne.s32.totalorder %s53, %s67
      %p69 = scmp.eq.s32.totalorder %s22, 0
      %p70 = por %p68, %p69
      %s72 = sadd.s32 %s71, 1
      %p75 = scmp.eq.s32.totalorder %s16, 1
      %p76 = scmp.ne.s32.totalorder %s71, %s73
      %p77 = scmp.eq.s32.totalorder %s16, 0
      %p78 = por %p76, %p77
      %p79 = scmp.ne.s32.totalorder %s71, %s73
      %p80 = scmp.eq.s32.totalorder %s21, 1
      %p81 = por %p79, %p80
      %p82 = scmp.ne.s32.totalorder %s73, %s74
      %p83 = scmp.eq.s32.totalorder %s21, 0
      %p84 = por %p82, %p83
      %p85 = scmp.ne.s32.totalorder %s73, %s74
      %p86 = scmp.eq.s32.totalorder %s22, 1
      %p87 = por %p85, %p86
      %p89 = scmp.ne.s32.totalorder %s74, %s88
      %p90 = scmp.eq.s32.totalorder %s22, 0
      %p91 = por %p89, %p90
      %s93 = sadd.s32 %s92, 1
      %p96 = scmp.eq.s32.totalorder %s16, 1
      %p97 = scmp.ne.s32.totalorder %s92, %s94
      %p98 = scmp.eq.s32.totalorder %s16, 0
      %p99 = por %p97, %p98
      %p100 = scmp.ne.s32.totalorder %s92, %s94
      %p101 = scmp.eq.s32.totalorder %s21, 1
      %p102 = por %p100, %p101
      %p103 = scmp.ne.s32.totalorder %s94, %s95
      %p104 = scmp.eq.s32.totalorder %s21, 0
      %p105 = por %p103, %p104
      %p106 = scmp.ne.s32.totalorder %s94, %s95
      %p107 = scmp.eq.s32.totalorder %s22, 1
      %p108 = por %p106, %p107
      %p110 = scmp.ne.s32.totalorder %s95, %s109
      %p111 = scmp.eq.s32.totalorder %s22, 0
      %p112 = por %p110, %p111
      %s114 = sadd.s32 %s113, 1
      %p117 = scmp.eq.s32.totalorder %s16, 1
      %p118 = scmp.ne.s32.totalorder %s113, %s115
      %p119 = scmp.eq.s32.totalorder %s16, 0
      %p120 = por %p118, %p119
      %p121 = scmp.ne.s32.totalorder %s113, %s115
      %p122 = scmp.eq.s32.totalorder %s21, 1
      %p123 = por %p121, %p122
      %p124 = scmp.ne.s32.totalorder %s115, %s116
      %p125 = scmp.eq.s32.totalorder %s21, 0
      %p126 = por %p124, %p125
      %p127 = scmp.ne.s32.totalorder %s115, %s116
      %p128 = scmp.eq.s32.totalorder %s22, 1
      %p129 = por %p127, %p128
      %p131 = scmp.ne.s32.totalorder %s116, %s130
      %p132 = scmp.eq.s32.totalorder %s22, 0
      %p133 = por %p131, %p132
      %s135 = sadd.s32 %s134, 1
      %p138 = scmp.eq.s32.totalorder %s16, 1
      %p139 = scmp.ne.s32.totalorder %s134, %s136
      %p140 = scmp.eq.s32.totalorder %s16, 0
      %p141 = por %p139, %p140
      %p142 = scmp.ne.s32.totalorder %s134, %s136
      %p143 = scmp.eq.s32.totalorder %s21, 1
      %p144 = por %p142, %p143
      %p145 = scmp.ne.s32.totalorder %s136, %s137
      %p146 = scmp.eq.s32.totalorder %s21, 0
      %p147 = por %p145, %p146
      %p148 = scmp.ne.s32.totalorder %s136, %s137
      %p149 = scmp.eq.s32.totalorder %s22, 1
      %p150 = por %p148, %p149
      %p152 = scmp.ne.s32.totalorder %s137, %s151
      %p153 = scmp.eq.s32.totalorder %s22, 0
      %p154 = por %p152, %p153
      %s156 = sadd.s32 %s155, 1
      %p159 = scmp.eq.s32.totalorder %s16, 1
      %p160 = scmp.ne.s32.totalorder %s155, %s157
      %p161 = scmp.eq.s32.totalorder %s16, 0
      %p162 = por %p160, %p161
      %p163 = scmp.ne.s32.totalorder %s155, %s157
      %p164 = scmp.eq.s32.totalorder %s21, 1
      %p165 = por %p163, %p164
      %p166 = scmp.ne.s32.totalorder %s157, %s158
      %p167 = scmp.eq.s32.totalorder %s21, 0
      %p168 = por %p166, %p167
      %p169 = scmp.ne.s32.totalorder %s157, %s158
      %p170 = scmp.eq.s32.totalorder %s22, 1
      %p171 = por %p169, %p170
      %p173 = scmp.ne.s32.totalorder %s158, %s172
      %p174 = scmp.eq.s32.totalorder %s22, 0
      %p175 = por %p173, %p174
      %s176 = ssub.s32 %s16, %s23
      %p177 = scmp.eq.s32.totalorder %s176, 0
      %s179 = sadd.s32 %s178, 1
      %s180 = scalar_select %p177, %s178, %s179
      %p183 = pneg %p177
      %p184 = scmp.eq.s32.totalorder %s16, 1
      %p185 = por %p183, %p184
      %p186 = scmp.ne.s32.totalorder %s178, %s181
      %p187 = scmp.eq.s32.totalorder %s16, 0
      %p188 = por %p186, %p187
      %p189 = scmp.ne.s32.totalorder %s178, %s181
      %p190 = scmp.eq.s32.totalorder %s21, 1
      %p191 = por %p189, %p190
      %p192 = scmp.ne.s32.totalorder %s181, %s182
      %p193 = scmp.eq.s32.totalorder %s21, 0
      %p194 = por %p192, %p193
      %p195 = scmp.ne.s32.totalorder %s181, %s182
      %p196 = scmp.eq.s32.totalorder %s22, 1
      %p197 = por %p195, %p196
      %p199 = scmp.ne.s32.totalorder %s182, %s198
      %p200 = scmp.eq.s32.totalorder %s22, 0
      %p201 = por %p199, %p200
      %p202 = scmp.le.s32.totalorder 1, %s16
      %p203 = scmp.lt.s32.totalorder %s16, 3
      %p204 = pnand %p202, %p203
      %p205 = pneg %p204
      // Predicated region
      $region9: #{tpu_custom_call.1} parent=5 // pred_check
        _
      $region10: #{tpu_custom_call.1} parent=5 // pred_check_branch
        %207 = sbr.rel (%p204) target = $region12
      $region11: #{tpu_custom_call.1} parent=5 // pred_region
        %s208 = ssub.s32 %s16, 1
        // Predicated region
        $region13: #{tpu_custom_call.1} parent=11 // pred_check
          %p209 = pneg %p63
        $region14: #{tpu_custom_call.1} parent=11 // pred_check_branch
          %211 = sbr.rel (%p209) target = $region16
        $region15: #{tpu_custom_call.1} parent=11 // pred_region
          _
        $region16: #{tpu_custom_call.1} parent=11 // pred_fallthru
          _
        // Predicated region
        $region17: #{tpu_custom_call.1} parent=11 // pred_check
          %p212 = pneg %p84
        $region18: #{tpu_custom_call.1} parent=11 // pred_check_branch
          %214 = sbr.rel (%p212) target = $region20
        $region19: #{tpu_custom_call.1} parent=11 // pred_region
          _
        $region20: #{tpu_custom_call.1} parent=11 // pred_fallthru
          _
        // Predicated region
        $region21: #{tpu_custom_call.1} parent=11 // pred_check
          %p215 = pneg %p105
        $region22: #{tpu_custom_call.1} parent=11 // pred_check_branch
          %217 = sbr.rel (%p215) target = $region24
        $region23: #{tpu_custom_call.1} parent=11 // pred_region
          _
        $region24: #{tpu_custom_call.1} parent=11 // pred_fallthru
          _
        // Predicated region
        $region25: #{tpu_custom_call.1} parent=11 // pred_check
          %p218 = pneg %p126
        $region26: #{tpu_custom_call.1} parent=11 // pred_check_branch
          %220 = sbr.rel (%p218) target = $region28
        $region27: #{tpu_custom_call.1} parent=11 // pred_region
          _
        $region28: #{tpu_custom_call.1} parent=11 // pred_fallthru
          _
        // Predicated region
        $region29: #{tpu_custom_call.1} parent=11 // pred_check
          %p221 = pneg %p147
        $region30: #{tpu_custom_call.1} parent=11 // pred_check_branch
          %223 = sbr.rel (%p221) target = $region32
        $region31: #{tpu_custom_call.1} parent=11 // pred_region
          _
        $region32: #{tpu_custom_call.1} parent=11 // pred_fallthru
          _
        // Predicated region
        $region33: #{tpu_custom_call.1} parent=11 // pred_check
          %p224 = pneg %p168
        $region34: #{tpu_custom_call.1} parent=11 // pred_check_branch
          %226 = sbr.rel (%p224) target = $region36
        $region35: #{tpu_custom_call.1} parent=11 // pred_region
          _
        $region36: #{tpu_custom_call.1} parent=11 // pred_fallthru
          _
      $region12: #{tpu_custom_call.1} parent=5 // pred_fallthru
        _
      %p227 = scmp.lt.s32.totalorder %s16, 2
      // Predicated region
      $region37: #{tpu_custom_call.1} parent=5 // pred_check
        %p228 = pneg %p227
      $region38: #{tpu_custom_call.1} parent=5 // pred_check_branch
        %230 = sbr.rel (%p228) target = $region40
      $region39: #{tpu_custom_call.1} parent=5 // pred_region
        // Predicated region
        $region41: #{tpu_custom_call.1} parent=39 // pred_check
          %p231 = pneg %p36
        $region42: #{tpu_custom_call.1} parent=39 // pred_check_branch
          %233 = sbr.rel (%p231) target = $region44
        $region43: #{tpu_custom_call.1} parent=39 // pred_region
          %p234 = scmp.lt.s32.totalorder %s16, 1
          %s235 = scalar_select %p234, %s16, 1
          %s236 = smul.addr %s235, 4
          %s237 = scalar_lea.vmem %s0, %s236
        $region44: #{tpu_custom_call.1} parent=39 // pred_fallthru
          _
      $region40: #{tpu_custom_call.1} parent=5 // pred_fallthru
        _
      %p238 = scmp.le.s32.totalorder 1, %s16
      %p239 = scmp.lt.s32.totalorder %s16, 3
      %p240 = pnand %p238, %p239
      %p241 = pneg %p240
      // Predicated region
      $region45: #{tpu_custom_call.1} parent=5 // pred_check
        _
      $region46: #{tpu_custom_call.1} parent=5 // pred_check_branch
        %243 = sbr.rel (%p240) target = $region48
      $region47: #{tpu_custom_call.1} parent=5 // pred_region
        %s244 = ssub.s32 %s16, 1
        %p245 = scmp.lt.s32.totalorder %s21, 1
        %s246 = scalar_select %p245, %s21, 1
        %s247 = smul.addr %s246, 4
        %s248 = scalar_lea.vmem %s0, %s247
        %p249 = pneg %p42
        %p250 = pneg %p39
        %p251 = pneg %p63
        %p252 = pneg %p60
        %p253 = pneg %p84
        %p254 = pneg %p81
        %p255 = pneg %p105
        %p256 = pneg %p102
        %p257 = pneg %p126
        %p258 = pneg %p123
        %p259 = pneg %p147
        %p260 = pneg %p144
        %p261 = pneg %p168
        %p262 = pneg %p165
        %p263 = pneg %p194
        %p264 = pneg %p191
        %s265 = sand.u32 %s181, 1
        %s266 = scalar_lea.sflag [#allocation3], %s265
        %s267 = sand.u32 %s181, 1
        %s268 = smul.addr %s267, 8
        %s269 = scalar_lea.vmem [#allocation2], %s268
        %p270 = scmp.lt.s32.totalorder %s21, 1
        %s271 = scalar_select %p270, %s21, 1
        %s272 = smul.addr %s271, 4
        %s273 = scalar_lea.vmem %s0, %s272
        %v274 = vld [vmem:[%s273] sm:$0xf]
        %v275 = vld [vmem:[%s4] sm:$0xff]
        %v276 = vld [vmem:[%s5] sm:$0xff]
        %278 = vset.pattern.permute.xlu0 0
        %279 = vperm.xlu0 %278, %v276
        %v280 = vpop.permute.xlu0 %279
        %vm282 = vcmask 31744
        %v284 = vsel %vm282, %v275, 0
        %vm286 = vcmask 1043456
        %v288 = vsel %vm286, %v274, 0
        %290 = vmatpush.msra.mxu0 0.0
        %291 = vmatpush.msra.mxu0 0.0
        %292 = vmatpush.msra.mxu0 0.0
        %293 = vmatpush.msra.mxu0 0.0
        %294 = vmatpush.msra.mxu0 0.0
        %295 = vmatpush.msra.mxu0 0.0
        %296 = vmatpush.msra.mxu0 0.0
        %297 = vmatpush.msra.mxu0 0.0
        %298 = vmatpush.msra.mxu0 0.0
        %299 = vmatpush.msra.mxu0 0.0
        %300 = vmatpush.msra.mxu0 0.0
        %301 = vmatpush.msra.mxu0 0.0
        %302 = vmatpush.msra.mxu0 0.0
        %303 = vmatpush.msra.mxu0 0.0
        %304 = vmatpush.msra.mxu0 0.0
        %305 = vmatpush.msra.mxu0 %v288
        %306 = vmatmul.f32.gmra.mxu0 %v284
        %v307 = vpop.f32.mrf.mxu0
        %v308 = vadd.f32 %v280, %v307
        %309 = vdwg.mxu0
        %310 = vrot.lane.b32.xlu0 %v274, 4
        %v311 = vpop.permute.xlu0 %310
        %v313 = vsel %vm282, 0.0, %v311
        %v315 = vrot.slane %v313, 4
        %316 = vrot.lane.b32.xlu0 %v315, 126
        %v317 = vpop.permute.xlu0 %316
        %319 = vrot.lane.b32.xlu0 %v313, 124
        %v320 = vpop.permute.xlu0 %319
        %v321 = vsel %vm286, %v313, %v317
        %v322 = vld [vmem:[%s1] sm:$0xff]
        %v323 = vld [vmem:[%s3] sm:$0xff]
        %325 = vset.pattern.permute.xlu0 0
        %326 = vperm.xlu0 %325, %v323
        %v327 = vpop.permute.xlu0 %326
        %vm329 = vcmask 97280
        %v331 = vsel %vm329, %v322, 0
        %v333 = vsel %vm286, %v320, 0
        %335 = vmatpush.msra.mxu0 0.0
        %336 = vmatpush.msra.mxu0 0.0
        %337 = vmatpush.msra.mxu0 0.0
        %338 = vmatpush.msra.mxu0 0.0
        %339 = vmatpush.msra.mxu0 0.0
        %340 = vmatpush.msra.mxu0 0.0
        %341 = vmatpush.msra.mxu0 0.0
        %342 = vmatpush.msra.mxu0 0.0
        %343 = vmatpush.msra.mxu0 0.0
        %344 = vmatpush.msra.mxu0 0.0
        %345 = vmatpush.msra.mxu0 0.0
        %346 = vmatpush.msra.mxu0 0.0
        %347 = vmatpush.msra.mxu0 0.0
        %348 = vmatpush.msra.mxu0 0.0
        %349 = vmatpush.msra.mxu0 %v333
        %350 = vmatpush.msra.mxu0 %v321
        %351 = vmatmul.f32.gmra.mxu0 %v331
        %v352 = vpop.f32.mrf.mxu0
        %v353 = vadd.f32 %v327, %v352
        %354 = vdwg.mxu0
        %v355 = vmax.f32 %v353, 0.0
        %v356 = vld [vmem:[%s6] sm:$0xff]
        %v357 = vadd.f32 %v355, %v356
        %359 = vrot.lane.b32.xlu0 %v357, 4
        %v360 = vpop.permute.xlu0 %359
        %v362 = vsel %vm282, 0.0, %v360
        %364 = vrot.lane.b32.xlu0 %v362, 126
        %v365 = vpop.permute.xlu0 %364
        %367 = vrot.lane.b32.xlu0 %v362, 124
        %v368 = vpop.permute.xlu0 %367
        %v370 = vld [vmem:[%s2] sm:$0xff]
        %s371 = scalar_lea.vmem %s3, 8
        %v372 = vld [vmem:[%s371] sm:$0xff]
        %374 = vset.pattern.permute.xlu0 0
        %375 = vperm.xlu0 %374, %v372
        %v376 = vpop.permute.xlu0 %375
        %vm378 = vcmask 195584
        %v380 = vsel %vm378, %v370, 0
        %382 = vmatpush.msra.mxu0 0.0
        %383 = vmatpush.msra.mxu0 0.0
        %384 = vmatpush.msra.mxu0 0.0
        %385 = vmatpush.msra.mxu0 0.0
        %386 = vmatpush.msra.mxu0 0.0
        %387 = vmatpush.msra.mxu0 0.0
        %388 = vmatpush.msra.mxu0 0.0
        %389 = vmatpush.msra.mxu0 0.0
        %390 = vmatpush.msra.mxu0 0.0
        %391 = vmatpush.msra.mxu0 0.0
        %392 = vmatpush.msra.mxu0 0.0
        %393 = vmatpush.msra.mxu0 0.0
        %394 = vmatpush.msra.mxu0 0.0
        %395 = vmatpush.msra.mxu0 %v368
        %396 = vmatpush.msra.mxu0 %v365
        %397 = vmatpush.msra.mxu0 %v362
        %398 = vmatmul.f32.gmra.mxu0 %v380
        %v399 = vpop.f32.mrf.mxu0
        %v400 = vadd.f32 %v376, %v399
        %401 = vdwg.mxu0
        %v402 = vadd.f32 %v400, %v308
        %vm403 = vcmask 130048
        %404 = vst.msk [vmem:[%s269] sm:$0xff] %vm403, %v402
        %s405 = sand.u32 %s181, 1
        %s406 = scalar_lea.sflag [#allocation3], %s405
        %s407 = sand.u32 %s181, 1
        %s408 = smul.addr %s407, 8
        %s409 = scalar_lea.vmem [#allocation2], %s408
        // Predicated region
        $region49: #{tpu_custom_call.1} parent=47 // pred_check
          %p410 = pneg %p191
        $region50: #{tpu_custom_call.1} parent=47 // pred_check_branch
          %412 = sbr.rel (%p410) target = $region52
        $region51: #{tpu_custom_call.1} parent=47 // pred_region
          %414 = vsyncadd %s406, 0
          %s415 = smul.addr %s21, 8
          %s416 = scalar_lea.hbm %s7, %s415
          %s418 = sshll.u32 %s409, 4
          %s419 = int_to_ptr.vmem [resolvable:$true] %s418
          %s420 = sshll.u32 %s416, 4
          %s421 = int_to_ptr.hbm [resolvable:$true] %s420
          %423 = dma.vmem_to_hbm [thread:$0]  %s419, 128, %s421, %s406
        $region52: #{tpu_custom_call.1} parent=47 // pred_fallthru
          _
      $region48: #{tpu_custom_call.1} parent=5 // pred_fallthru
        _
      %p424 = scmp.le.s32.totalorder 2, %s16
      // Predicated region
      $region53: #{tpu_custom_call.1} parent=5 // pred_check
        %p425 = pneg %p424
      $region54: #{tpu_custom_call.1} parent=5 // pred_check_branch
        %427 = sbr.rel (%p425) target = $region56
      $region55: #{tpu_custom_call.1} parent=5 // pred_region
        %s428 = ssub.s32 %s16, 2
        // Predicated region
        $region57: #{tpu_custom_call.1} parent=55 // pred_check
          %p429 = pneg %p197
        $region58: #{tpu_custom_call.1} parent=55 // pred_check_branch
          %431 = sbr.rel (%p429) target = $region60
        $region59: #{tpu_custom_call.1} parent=55 // pred_region
          %s432 = sand.u32 %s182, 1
          %s433 = scalar_lea.sflag [#allocation3], %s432
          %s434 = sand.u32 %s182, 1
          %s435 = smul.addr %s434, 8
          %s436 = scalar_lea.vmem [#allocation2], %s435
          %438 = dma.done %s433, 128
        $region60: #{tpu_custom_call.1} parent=55 // pred_fallthru
          _
      $region56: #{tpu_custom_call.1} parent=5 // pred_fallthru
        _
    $region6: #{tpu_custom_call.1} parent=1 // loop_footer
      %s20 = sadd.s32 1, %s16
    $region7: #{tpu_custom_call.1} parent=1 // loop_footer_branch
      %15 = sbr.rel target = $region3
    $region8: #{tpu_custom_call.1} parent=1 // loop_exit
      _
    %439 = vsyncpa [#allocation3], 1
    %s440 = scalar_lea.sflag [#allocation3], 1
    %441 = vsyncpa %s440, 1

</llo_original>
